<compile_context>
chip_gen: v7x
topology: tpu7x:2x2x1
jax: 0.10.0
libtpu: 0.0.40
codegen_flags: <defaults>
</compile_context>

<pallas_src>
import functools

import jax
import jax.numpy as jnp
from jax.experimental import pallas as pl
from jax.experimental.pallas import tpu as pltpu


def _maxpool_stride1_kernel(x_ref, o_ref, *, H, W):
    """x_ref / o_ref: (BC, H*W) VMEM tiles; each row is one flattened plane."""
    hw = H * W
    x = x_ref[...]

    # XLU lane rotation only when the lane extent is 128-aligned; otherwise
    # fall back to slice+concat (handles odd planes such as 13x13).
    use_roll = (hw % 128) == 0

    # One lane-index iota feeds every boundary mask.
    need_lane = (W > 1) or (H > 1 and use_roll)
    lane = (jax.lax.broadcasted_iota(jnp.int32, x.shape, 1)
            if need_lane else None)

    # --- shift down one row (replicate last row), then max -----------------
    if H > 1:
        if use_roll:
            # rolled[j] = x[(j + W) % hw]; the wrap only touches the last row,
            # where the replicate pad means "keep x".
            x_down = pltpu.roll(x, hw - W, axis=1)
            last_row = lane >= hw - W
            v = jnp.maximum(x, jnp.where(last_row, x, x_down))
        else:
            # flat index j = h*W + w; value at j becomes x[j+W]; the last W
            # entries (row H-1) replicate themselves.
            x_down = jnp.concatenate([x[:, W:], x[:, -W:]], axis=1)
            v = jnp.maximum(x, x_down)
    else:
        v = x

    # --- shift right one column within each row (replicate last column) ----
    if W > 1:
        # w == W-1 mask: bit-and for power-of-two widths, constant modulo
        # (mul/shift) otherwise -- either way hidden under the DMA.
        w_idx = (lane & (W - 1)) if (W & (W - 1)) == 0 else (lane % W)
        last_col = w_idx == W - 1
        if use_roll:
            v_shift = pltpu.roll(v, hw - 1, axis=1)        # v[(j + 1) % hw]
        else:
            v_shift = jnp.concatenate([v[:, 1:], v[:, -1:]], axis=1)
        # At w == W-1 the flat shift would land in the next row's first column
        # (or wrap); the replicate pad means we just keep v there.
        v = jnp.maximum(v, jnp.where(last_col, v, v_shift))

    o_ref[...] = v


def _vmem_budget():
    """(target_block_bytes, vmem_limit_bytes) sized per TPU generation.

    Peak VMEM ~= 4x tile for the double-buffered in/out pipeline plus a few
    tile-sized compiler temporaries for the big vector values in the body, so
    we keep ~10x tile under the scoped limit and the limit itself well under
    the physical VMEM of the smallest targeted part (64 MiB/TC on v7x).
    """
    small = (4 << 20, 44 << 20)    # 64 MiB/TensorCore parts (v7x) & unknown
    large = (8 << 20, 80 << 20)    # 128 MiB/TensorCore parts (v4/v5e/v6e)
    try:
        kind = jax.devices()[0].device_kind.lower()
    except Exception:
        return small
    if "v2" in kind or "v3" in kind:    # small-VMEM legacy parts
        return (1 << 20, 12 << 20)
    if any(g in kind for g in ("v4", "v5", "v6")):
        return large
    return small


def _choose_block_rows(rows, hw, itemsize, target_bytes):
    """How many channel planes (sublane dim) go into one (bc, H*W) block."""
    # Dtype-aware sublane granularity: 8 rows for 4-byte, 16 for 2-byte,
    # 32 for 1-byte dtypes (only required when the block is a partial extent).
    sub = max(8, 32 // max(1, itemsize))

    bc = max(sub, target_bytes // max(1, hw * itemsize))

    # Prefer >= 2 grid steps when rows allow so the 'parallel' grid axis can
    # shard across both TensorCores on v7x (a 1-step grid idles one core);
    # costs one negligible extra step on 1-TC parts.
    if rows >= 2 * sub:
        half = -(-rows // 2)             # cdiv(rows, 2)
        half = -(-half // sub) * sub     # round up to the sublane multiple
        if half < rows:
            bc = min(bc, half)

    bc = min(bc, rows)
    if bc < rows:
        # Partial blocks must keep the sublane multiple; full extent is exempt.
        bc = min(rows, max(sub, (bc // sub) * sub))
    return int(bc)


def maxpool_stride1(x, *, target_block_bytes=None, vmem_limit_bytes=None):
    """MaxPoolStride1 forward. x: (N, C, H, W) -> (N, C, H, W)."""
    N, C, H, W = x.shape
    rows, hw = N * C, H * W
    itemsize = jnp.dtype(x.dtype).itemsize

    auto_target, auto_limit = _vmem_budget()
    target = auto_target if target_block_bytes is None else int(target_block_bytes)
    vlimit = auto_limit if vmem_limit_bytes is None else int(vmem_limit_bytes)

    bc = _choose_block_rows(rows, hw, itemsize, target)
    grid = (pl.cdiv(rows, bc),)

    xr = x.reshape(rows, hw)   # contiguous collapse: free, no data movement

    out = pl.pallas_call(
        functools.partial(_maxpool_stride1_kernel, H=H, W=W),
        out_shape=jax.ShapeDtypeStruct((rows, hw), x.dtype),
        grid=grid,
        in_specs=[pl.BlockSpec((bc, hw), lambda b: (b, 0))],
        out_specs=pl.BlockSpec((bc, hw), lambda b: (b, 0)),
        compiler_params=pltpu.CompilerParams(
            dimension_semantics=("parallel",),
            vmem_limit_bytes=vlimit,
        ),
    )(xr)

    return out.reshape(N, C, H, W)


def _reference(x):
    # Pure-JAX reference: replicate pad (bottom/right) + 2x2 stride-1 max pool.
    xp = jnp.pad(x, ((0, 0), (0, 0), (0, 1), (0, 1)), mode="edge")
    H, W = x.shape[-2], x.shape[-1]
    return jnp.maximum(
        jnp.maximum(xp[..., 0:H, 0:W], xp[..., 1:H + 1, 0:W]),
        jnp.maximum(xp[..., 0:H, 1:W + 1], xp[..., 1:H + 1, 1:W + 1]),
    )


def _check(x, **kw):
    out = maxpool_stride1(x, **kw)
    jax.block_until_ready(out)
    ref = _reference(x)
    assert out.shape == x.shape and out.dtype == x.dtype
    assert jnp.allclose(out, ref), f"mismatch vs reference for {x.shape} {x.dtype}"


if __name__ == "__main__":
    key = jax.random.PRNGKey(0)
    k1, k2, k3, k4 = jax.random.split(key, 4)

    # main case (small shape consistent with the module); 128-aligned plane
    # -> pltpu.roll path, single-step grid
    _check(jax.random.normal(k1, (2, 4, 16, 16), dtype=jnp.float32))

    # odd DarkNet/YOLO spatial size (13x13) -> concat fallback path; rows=32
    # split into two blocks so the parallel grid axis has >= 2 steps
    _check(jax.random.normal(k2, (1, 32, 13, 13), dtype=jnp.float32))

    # multi-step grid with a partial trailing block (rows=20, bc=8 -> grid=3)
    _check(jax.random.normal(k3, (1, 20, 16, 16), dtype=jnp.float32),
           target_block_bytes=8 * 16 * 16 * 4)

    # bf16: exercises the 16-row sublane-packing granularity (bc=16, grid=2)
    _check(jax.random.normal(k4, (1, 32, 13, 13)).astype(jnp.bfloat16))

    print("KERNEL_OK")
</pallas_src>

<mosaic_0001>
module attributes {stable_mosaic.version = 11 : i64} {
  func.func @_maxpool_stride1_kernel(%arg0: i32, %arg1: memref<8x256xf32, #tpu.memory_space<vmem>>, %arg2: memref<8x256xf32, #tpu.memory_space<vmem>>) attributes {dimension_semantics = [#tpu.dimension_semantics<parallel>], iteration_bounds = array<i64: 1>, scalar_prefetch = 0 : i64, scratch_operands = 0 : i64, tpu.core_type = #tpu.core_type<tc>, window_params = [{transform_indices = @transform_0, window_bounds = array<i64: 8, 256>}, {transform_indices = @transform_1, window_bounds = array<i64: 8, 256>}]} {
    %c0 = arith.constant 0 : index
    %c0_0 = arith.constant 0 : index
    %0 = vector.load %arg1[%c0, %c0_0] : memref<8x256xf32, #tpu.memory_space<vmem>>, vector<8x256xf32>
    %1 = tpu.iota {dimensions = array<i32: 1>} : vector<8x256xi32>
    %c240_i32 = arith.constant 240 : i32
    %2 = tpu.dynamic_rotate %0 by %c240_i32 dim 1 : vector<8x256xf32>, i32 -> vector<8x256xf32>
    %c240_i32_1 = arith.constant 240 : i32
    %3 = vector.broadcast %c240_i32_1 : i32 to vector<8x256xi32>
    %4 = arith.cmpi sge, %1, %3 : vector<8x256xi32>
    %5 = arith.select %4, %0, %2 : vector<8x256xi1>, vector<8x256xf32>
    %6 = arith.maximumf %0, %5 : vector<8x256xf32>
    %c15_i32 = arith.constant 15 : i32
    %7 = vector.broadcast %c15_i32 : i32 to vector<8x256xi32>
    %8 = arith.andi %1, %7 : vector<8x256xi32>
    %c15_i32_2 = arith.constant 15 : i32
    %9 = vector.broadcast %c15_i32_2 : i32 to vector<8x256xi32>
    %10 = arith.cmpi eq, %8, %9 : vector<8x256xi32>
    %c255_i32 = arith.constant 255 : i32
    %11 = tpu.dynamic_rotate %6 by %c255_i32 dim 1 : vector<8x256xf32>, i32 -> vector<8x256xf32>
    %12 = arith.select %10, %6, %11 : vector<8x256xi1>, vector<8x256xf32>
    %13 = arith.maximumf %6, %12 : vector<8x256xf32>
    %c0_3 = arith.constant 0 : index
    %c0_4 = arith.constant 0 : index
    %14 = vector.load %arg2[%c0_3, %c0_4] : memref<8x256xf32, #tpu.memory_space<vmem>>, vector<8x256xf32>
    tpu.vector_store %arg2[%c0_3, %c0_4], %13 {strides = array<i32>} : memref<8x256xf32, #tpu.memory_space<vmem>>, vector<8x256xf32>,
    return
  }
  func.func @transform_0(%arg0: i32) -> (i32, i32) {
    %c0_i32 = arith.constant 0 : i32
    %c0_i32_0 = arith.constant 0 : i32
    return %arg0, %c0_i32 : i32, i32
  }
  func.func @transform_1(%arg0: i32) -> (i32, i32) {
    %c0_i32 = arith.constant 0 : i32
    %c0_i32_0 = arith.constant 0 : i32
    return %arg0, %c0_i32 : i32, i32
  }
}

</mosaic_0001>

<llo_original>
// kernel: tpu_custom_call.1
$region0: #{tpu_custom_call.1}
  #allocation0 [shape = 'u32[]', space=smem, size = 0x4, offset = 0x4, fixed_abs, tag = 'smem constant byte address 0x4 - core index']
  #allocation1 [shape = 'u32[144,128]{1,0:T(1,128)}', space=vmem, size = 0x12000, scoped, tag = 'internal scratch']
  %s0 = inlined_call_operand.hbm [shape: f32[8,256], index: 0, kind: input, shape index: {}]
  %s1 = inlined_call_operand.hbm [shape: f32[8,256], index: 1, kind: output, shape index: {}]
  %s2 = sld [smem:[#allocation0]]
  $region18: #{tpu_custom_call.1} parent=0
    _
  %s4 = ssub.s32 1, %s2
  %s5 = scalar_select 0, %s4, %s2
  $region1: #{tpu_custom_call.1} parent=0
    #allocation2 [shape = 'u8[8192]{0}', space=vmem, size = 0x2000, scoped, tag = 'input window, operand 0, single buffered']
    #allocation3 [shape = 's32[1]{0}', space=sflag, size = 0x4, scoped, tag = 'scoped memory for tpu_custom_call.1']
    #allocation4 [shape = 's32[1]{0}', space=sflag, size = 0x4, scoped, tag = 'scoped memory for tpu_custom_call.1']
    #allocation5 [shape = 'u8[8192]{0}', space=vmem, size = 0x2000, scoped, tag = 'output window, operand 0, single buffered']
    %6 = vsyncpa [#allocation3], 0
    %7 = vsyncpa [#allocation4], 0
    // Predicated region
    $region2: #{tpu_custom_call.1} parent=1 // pred_check
      _
    $region3: #{tpu_custom_call.1} parent=1 // pred_check_branch
      %9 = sbr.rel (0) target = $region5
    $region4: #{tpu_custom_call.1} parent=1 // pred_region
      %s11 = ssub.s32 256, 256
      %12 = vsyncadd [#allocation3], %s11
      %s14 = sshll.u32 [#allocation2], 4
      %s15 = int_to_ptr.vmem [resolvable:$true] %s14
      %17 = dma.hbm_to_vmem [thread:$0]  %s0, 256, %s15, [#allocation3]
    $region5: #{tpu_custom_call.1} parent=1 // pred_fallthru
      _
    // Predicated region
    $region6: #{tpu_custom_call.1} parent=1 // pred_check
      _
    $region7: #{tpu_custom_call.1} parent=1 // pred_check_branch
      %19 = sbr.rel (0) target = $region9
    $region8: #{tpu_custom_call.1} parent=1 // pred_region
      %20 = dma.done [#allocation3], 256
    $region9: #{tpu_custom_call.1} parent=1 // pred_fallthru
      _
    %v21 = vld [vmem:[#allocation2] sm:$0xff]
    %v22 = vld [vmem:[#allocation2 + $0x8] sm:$0xff]
    %v23 = vlaneseq
    %v24 = vand.u32 %v23, 127
    %v25 = vadd.s32 %v24, 128
    %26 = vrot.lane.b32.xlu0 %v21, 112
    %v27 = vpop.permute.xlu0 %26
    %28 = vrot.lane.b32.xlu0 %v22, 112
    %v29 = vpop.permute.xlu0 %28
    %vm30 = vcmp.lt.s32.totalorder %v24, 112
    %v31 = vsel %vm30, %v27, %v29
    %v32 = vsel %vm30, %v29, %v27
    %vm33 = vcmp.ge.s32.totalorder %v24, 240
    %vm34 = vcmp.ge.s32.totalorder %v25, 240
    %v35 = vsel %vm33, %v21, %v31
    %v36 = vsel %vm34, %v22, %v32
    %v37 = vmax.f32 %v21, %v35
    %v38 = vmax.f32 %v22, %v36
    %v39 = vand.u32 %v24, 15
    %v40 = vand.u32 %v25, 15
    %vm41 = vcmp.eq.s32.totalorder %v39, 15
    %vm42 = vcmp.eq.s32.totalorder %v40, 15
    %43 = vrot.lane.b32.xlu0 %v37, 127
    %v44 = vpop.permute.xlu0 %43
    %45 = vrot.lane.b32.xlu0 %v38, 127
    %v46 = vpop.permute.xlu0 %45
    %vm47 = vcmp.lt.s32.totalorder %v24, 127
    %v48 = vsel %vm47, %v44, %v46
    %v49 = vsel %vm47, %v46, %v44
    %v50 = vsel %vm41, %v37, %v48
    %v51 = vsel %vm42, %v38, %v49
    %v52 = vmax.f32 %v37, %v50
    %v53 = vmax.f32 %v38, %v51
    %54 = vst [vmem:[#allocation5] sm:$0xff] %v52
    %55 = vst [vmem:[#allocation5 + $0x8] sm:$0xff] %v53
    // Predicated region
    $region10: #{tpu_custom_call.1} parent=1 // pred_check
      _
    $region11: #{tpu_custom_call.1} parent=1 // pred_check_branch
      %57 = sbr.rel (0) target = $region13
    $region12: #{tpu_custom_call.1} parent=1 // pred_region
      %s59 = ssub.s32 256, 256
      %60 = vsyncadd [#allocation4], %s59
      %s62 = sshll.u32 [#allocation5], 4
      %s63 = int_to_ptr.vmem [resolvable:$true] %s62
      %65 = dma.vmem_to_hbm [thread:$0]  %s63, 256, %s1, [#allocation4]
    $region13: #{tpu_custom_call.1} parent=1 // pred_fallthru
      _
    // Predicated region
    $region14: #{tpu_custom_call.1} parent=1 // pred_check
      _
    $region15: #{tpu_custom_call.1} parent=1 // pred_check_branch
      %67 = sbr.rel (0) target = $region17
    $region16: #{tpu_custom_call.1} parent=1 // pred_region
      %68 = dma.done [#allocation4], 256
    $region17: #{tpu_custom_call.1} parent=1 // pred_fallthru
      _
    %69 = vsyncpa [#allocation3], 1
    %70 = vsyncpa [#allocation4], 1

</llo_original>
